<compile_context>
chip_gen: v7x
topology: tpu7x:2x2x1
jax: 0.10.0
libtpu: 0.0.40
codegen_flags: <defaults>
</compile_context>

<pallas_src>
import functools

import jax
import jax.numpy as jnp
from jax import lax
from jax.experimental import pallas as pl
from jax.experimental.pallas import tpu as pltpu

EPS = 1e-5


def resblock_kernel(x_ref, mask_ref, w1_ref, g1_ref, be1_ref,
                    w2_ref, g2_ref, be2_ref, o_ref, *, Wp, n_valid, lanes):
    x = x_ref[...]                      # (Cp, lanes) f32, lane-dense slab
    mask = mask_ref[...]                # (1, lanes): 1.0 at valid interior pixels
    inv_n = 1.0 / n_valid

    # 3x3 taps: output lane i reads input lane i + dh*Wp + dw, dh/dw in {-1,0,1}.
    deltas = [dh * Wp + dw for dh in (-1, 0, 1) for dw in (-1, 0, 1)]

    def conv3x3(a, w_mat):
        # im2col via 9 XLU lane rotations: roll(a, s)[:, i] == a[:, i - s],
        # so s = (-d) % lanes yields a[:, i + d].  One MXU matmul per conv
        # with the long spatial dim in the (lane-dense) output dimension.
        taps = [a if d == 0 else pltpu.roll(a, (-d) % lanes, axis=1)
                for d in deltas]
        im2col = jnp.concatenate(taps, axis=0)                    # (9*Cp, lanes)
        return jnp.dot(w_mat, im2col, preferred_element_type=jnp.float32)

    def bn_train(y, gamma, beta):
        # Training-mode BN over the n_valid interior pixels (biased variance).
        # `cen` is computed once and reused; gamma*rsqrt(var+eps) is pre-fused.
        mean = jnp.sum(y * mask, axis=1, keepdims=True) * inv_n   # (Cp, 1)
        cen = (y - mean) * mask
        var = jnp.sum(cen * cen, axis=1, keepdims=True) * inv_n
        scale = gamma * lax.rsqrt(var + EPS)
        return cen * scale + beta

    # conv1 -> BN1 -> ReLU; the trailing mask multiply re-creates the zero
    # padding that conv2's taps must see (replaces the padded scratch slab).
    h1 = jnp.maximum(
        bn_train(conv3x3(x, w1_ref[...]), g1_ref[...], be1_ref[...]), 0.0) * mask
    # conv2 -> BN2 -> + residual -> ReLU
    h2 = bn_train(conv3x3(h1, w2_ref[...]), g2_ref[...], be2_ref[...])
    o_ref[...] = (jnp.maximum(h2 + x, 0.0) * mask).astype(o_ref.dtype)


def residual_block(x_nchw, params):
    """NCHW in / NCHW out; repacks to the lane-dense layout and calls the kernel."""
    N, C, H, W = x_nchw.shape
    Hp, Wp = H + 2, W + 2
    Cp = ((C + 7) // 8) * 8                      # pad channels to sublane tile
    npix = N * Hp * Wp
    lanes = ((npix + 127) // 128) * 128          # pad flattened pixels to lane tile

    # ---- pack activations: NCHW -> (Cp, N*Hp*Wp) lane-dense slab ----
    x = x_nchw.astype(jnp.float32)
    x = jnp.pad(x, ((0, 0), (0, Cp - C), (1, 1), (1, 1)))   # channel + spatial pad
    x = jnp.transpose(x, (1, 0, 2, 3)).reshape(Cp, npix)
    x = jnp.pad(x, ((0, 0), (0, lanes - npix)))

    # ---- validity mask: 1 at interior pixels, 0 at zero-padding / lane tail ----
    ii = jnp.arange(lanes, dtype=jnp.int32)
    p = ii % (Hp * Wp)
    r, c = p // Wp, p % Wp
    mask = ((ii < npix) & (r >= 1) & (r <= H) & (c >= 1) & (c <= W))
    mask = mask.astype(jnp.float32)[None, :]

    # ---- pack parameters ----
    def prep_w(w):   # (3,3,Cin,Cout) HWIO -> (Cout_p, 9*Cin_p), col = (kh*3+kw)*Cp+cin
        w = jnp.pad(w, ((0, 0), (0, 0), (0, Cp - C), (0, Cp - C)))
        return jnp.transpose(w, (3, 0, 1, 2)).reshape(Cp, 9 * Cp)

    def prep_v(v):   # (1, C) per-channel vector -> (Cp, 1) sublane column
        return jnp.pad(v.reshape(C), (0, Cp - C)).reshape(Cp, 1)

    # NOTE: conv biases b1/b2 are intentionally NOT passed -- they cancel
    # exactly under training-mode BatchNorm.
    args = (x, mask,
            prep_w(params["w1"]), prep_v(params["g1"]), prep_v(params["be1"]),
            prep_w(params["w2"]), prep_v(params["g2"]), prep_v(params["be2"]))

    kernel = functools.partial(resblock_kernel, Wp=Wp, n_valid=N * H * W,
                               lanes=lanes)
    # Single-program call: the whole working set is ~0.5 MiB at these shapes.
    # TODO(synk): at production sizes (esp. v7x 64 MiB VMEM) tile over row bands
    # with a grid + BlockSpecs ("parallel" band axis) and turn BN into a
    # cross-tile two-pass reduction; raise vmem_limit_bytes accordingly.
    out = pl.pallas_call(
        kernel,
        out_shape=jax.ShapeDtypeStruct((Cp, lanes), jnp.float32),
        in_specs=[pl.BlockSpec(memory_space=pltpu.MemorySpace.VMEM)] * len(args),
        out_specs=pl.BlockSpec(memory_space=pltpu.MemorySpace.VMEM),
    )(*args)

    # ---- unpack: (Cp, lanes) -> NCHW interior ----
    out = out[:C, :npix].reshape(C, N, Hp, Wp)[:, :, 1:H + 1, 1:W + 1]
    return jnp.transpose(out, (1, 0, 2, 3))


# ---------------- pure-JAX reference (for correctness check) ----------------
def _ref_conv(x, w, b):
    y = lax.conv_general_dilated(
        x, w, window_strides=(1, 1), padding="SAME",
        dimension_numbers=("NHWC", "HWIO", "NHWC"),
        precision=lax.Precision.HIGHEST)
    return y + b.reshape(1, 1, 1, -1)


def _ref_bn(y, g, be):
    mean = jnp.mean(y, axis=(0, 1, 2), keepdims=True)
    var = jnp.mean((y - mean) ** 2, axis=(0, 1, 2), keepdims=True)
    return (y - mean) * lax.rsqrt(var + EPS) * g.reshape(1, 1, 1, -1) \
        + be.reshape(1, 1, 1, -1)


def ref_residual_block(x_nchw, p):
    x = jnp.transpose(x_nchw, (0, 2, 3, 1)).astype(jnp.float32)
    h = jnp.maximum(_ref_bn(_ref_conv(x, p["w1"], p["b1"]), p["g1"], p["be1"]), 0.0)
    h = _ref_bn(_ref_conv(h, p["w2"], p["b2"]), p["g2"], p["be2"])
    h = jnp.maximum(h + x, 0.0)
    return jnp.transpose(h, (0, 3, 1, 2))


if __name__ == "__main__":
    N, C, H, W = 2, 4, 16, 16
    key = jax.random.PRNGKey(0)
    k = jax.random.split(key, 9)

    x = jax.random.normal(k[0], (N, C, H, W), jnp.float32)
    # Deterministic synthetic parameters (shapes from nn.Conv2d / nn.BatchNorm2d).
    params = dict(
        w1=0.2 * jax.random.normal(k[1], (3, 3, C, C), jnp.float32),
        b1=0.1 * jax.random.normal(k[2], (1, C), jnp.float32),
        g1=1.0 + 0.1 * jax.random.normal(k[3], (1, C), jnp.float32),
        be1=0.1 * jax.random.normal(k[4], (1, C), jnp.float32),
        w2=0.2 * jax.random.normal(k[5], (3, 3, C, C), jnp.float32),
        b2=0.1 * jax.random.normal(k[6], (1, C), jnp.float32),
        g2=1.0 + 0.1 * jax.random.normal(k[7], (1, C), jnp.float32),
        be2=0.1 * jax.random.normal(k[8], (1, C), jnp.float32),
    )

    out = residual_block(x, params)
    out = jax.block_until_ready(out)

    ref = ref_residual_block(x, params)   # includes conv bias; proves it cancels
    assert out.shape == x.shape
    assert bool(jnp.allclose(out, ref, atol=2e-3, rtol=2e-3)), \
        float(jnp.max(jnp.abs(out - ref)))

    print("KERNEL_OK")
</pallas_src>

<mosaic_0001>
module attributes {stable_mosaic.version = 11 : i64} {
  func.func @resblock_kernel(%arg0: memref<8x768xf32, #tpu.memory_space<vmem>>, %arg1: memref<1x768xf32, #tpu.memory_space<vmem>>, %arg2: memref<8x72xf32, #tpu.memory_space<vmem>>, %arg3: memref<8x1xf32, #tpu.memory_space<vmem>>, %arg4: memref<8x1xf32, #tpu.memory_space<vmem>>, %arg5: memref<8x72xf32, #tpu.memory_space<vmem>>, %arg6: memref<8x1xf32, #tpu.memory_space<vmem>>, %arg7: memref<8x1xf32, #tpu.memory_space<vmem>>, %arg8: memref<8x768xf32, #tpu.memory_space<vmem>>) attributes {dimension_semantics = [], scalar_prefetch = 0 : i64, scratch_operands = 0 : i64, tpu.core_type = #tpu.core_type<tc>} {
    %c0 = arith.constant 0 : index
    %c0_0 = arith.constant 0 : index
    %0 = vector.load %arg0[%c0, %c0_0] : memref<8x768xf32, #tpu.memory_space<vmem>>, vector<8x768xf32>
    %c0_1 = arith.constant 0 : index
    %c0_2 = arith.constant 0 : index
    %1 = vector.load %arg1[%c0_1, %c0_2] : memref<1x768xf32, #tpu.memory_space<vmem>>, vector<1x768xf32>
    %c0_3 = arith.constant 0 : index
    %c0_4 = arith.constant 0 : index
    %2 = vector.load %arg2[%c0_3, %c0_4] : memref<8x72xf32, #tpu.memory_space<vmem>>, vector<8x72xf32>
    %c19_i32 = arith.constant 19 : i32
    %3 = tpu.dynamic_rotate %0 by %c19_i32 dim 1 : vector<8x768xf32>, i32 -> vector<8x768xf32>
    %c18_i32 = arith.constant 18 : i32
    %4 = tpu.dynamic_rotate %0 by %c18_i32 dim 1 : vector<8x768xf32>, i32 -> vector<8x768xf32>
    %c17_i32 = arith.constant 17 : i32
    %5 = tpu.dynamic_rotate %0 by %c17_i32 dim 1 : vector<8x768xf32>, i32 -> vector<8x768xf32>
    %c1_i32 = arith.constant 1 : i32
    %6 = tpu.dynamic_rotate %0 by %c1_i32 dim 1 : vector<8x768xf32>, i32 -> vector<8x768xf32>
    %c767_i32 = arith.constant 767 : i32
    %7 = tpu.dynamic_rotate %0 by %c767_i32 dim 1 : vector<8x768xf32>, i32 -> vector<8x768xf32>
    %c751_i32 = arith.constant 751 : i32
    %8 = tpu.dynamic_rotate %0 by %c751_i32 dim 1 : vector<8x768xf32>, i32 -> vector<8x768xf32>
    %c750_i32 = arith.constant 750 : i32
    %9 = tpu.dynamic_rotate %0 by %c750_i32 dim 1 : vector<8x768xf32>, i32 -> vector<8x768xf32>
    %c749_i32 = arith.constant 749 : i32
    %10 = tpu.dynamic_rotate %0 by %c749_i32 dim 1 : vector<8x768xf32>, i32 -> vector<8x768xf32>
    %11 = tpu.concatenate %3, %4, %5, %6, %0, %7, %8, %9, %10 in 0 : vector<8x768xf32>, vector<8x768xf32>, vector<8x768xf32>, vector<8x768xf32>, vector<8x768xf32>, vector<8x768xf32>, vector<8x768xf32>, vector<8x768xf32>, vector<8x768xf32> -> vector<72x768xf32>
    %cst = arith.constant dense<0.000000e+00> : vector<8x768xf32>
    %12 = tpu.matmul %2, %11, %cst {dimension_numbers = #tpu.dot_dimension_numbers<[1], [0], [0], [1], [0, 0, 1, 1], [], []>} : vector<8x72xf32>, vector<72x768xf32>, vector<8x768xf32> -> vector<8x768xf32>
    %c0_5 = arith.constant 0 : index
    %c0_6 = arith.constant 0 : index
    %13 = vector.load %arg3[%c0_5, %c0_6] : memref<8x1xf32, #tpu.memory_space<vmem>>, vector<8x1xf32>
    %c0_7 = arith.constant 0 : index
    %c0_8 = arith.constant 0 : index
    %14 = vector.load %arg4[%c0_7, %c0_8] : memref<8x1xf32, #tpu.memory_space<vmem>>, vector<8x1xf32>
    %15 = vector.broadcast %1 : vector<1x768xf32> to vector<8x768xf32>
    %16 = arith.mulf %12, %15 : vector<8x768xf32>
    %cst_9 = arith.constant dense<0.000000e+00> : vector<8xf32>
    %17 = vector.multi_reduction <add>, %16, %cst_9 [1] : vector<8x768xf32> to vector<8xf32>
    %18 = vector.shape_cast %17 : vector<8xf32> to vector<8x1xf32>
    %cst_10 = arith.constant 0.001953125 : f32
    %19 = vector.broadcast %cst_10 : f32 to vector<8x1xf32>
    %20 = arith.mulf %18, %19 : vector<8x1xf32>
    %21 = vector.broadcast %20 : vector<8x1xf32> to vector<8x768xf32>
    %22 = arith.subf %12, %21 : vector<8x768xf32>
    %23 = vector.broadcast %1 : vector<1x768xf32> to vector<8x768xf32>
    %24 = arith.mulf %22, %23 : vector<8x768xf32>
    %25 = arith.mulf %24, %24 : vector<8x768xf32>
    %cst_11 = arith.constant dense<0.000000e+00> : vector<8xf32>
    %26 = vector.multi_reduction <add>, %25, %cst_11 [1] : vector<8x768xf32> to vector<8xf32>
    %27 = vector.shape_cast %26 : vector<8xf32> to vector<8x1xf32>
    %cst_12 = arith.constant 0.001953125 : f32
    %28 = vector.broadcast %cst_12 : f32 to vector<8x1xf32>
    %29 = arith.mulf %27, %28 : vector<8x1xf32>
    %cst_13 = arith.constant 9.99999974E-6 : f32
    %30 = vector.broadcast %cst_13 : f32 to vector<8x1xf32>
    %31 = arith.addf %29, %30 : vector<8x1xf32>
    %32 = math.rsqrt %31 : vector<8x1xf32>
    %33 = arith.mulf %13, %32 : vector<8x1xf32>
    %34 = vector.broadcast %33 : vector<8x1xf32> to vector<8x768xf32>
    %35 = arith.mulf %24, %34 : vector<8x768xf32>
    %36 = vector.broadcast %14 : vector<8x1xf32> to vector<8x768xf32>
    %37 = arith.addf %35, %36 : vector<8x768xf32>
    %cst_14 = arith.constant 0.000000e+00 : f32
    %38 = vector.broadcast %cst_14 : f32 to vector<8x768xf32>
    %39 = arith.maximumf %37, %38 : vector<8x768xf32>
    %40 = vector.broadcast %1 : vector<1x768xf32> to vector<8x768xf32>
    %41 = arith.mulf %39, %40 : vector<8x768xf32>
    %c0_15 = arith.constant 0 : index
    %c0_16 = arith.constant 0 : index
    %42 = vector.load %arg5[%c0_15, %c0_16] : memref<8x72xf32, #tpu.memory_space<vmem>>, vector<8x72xf32>
    %c19_i32_17 = arith.constant 19 : i32
    %43 = tpu.dynamic_rotate %41 by %c19_i32_17 dim 1 : vector<8x768xf32>, i32 -> vector<8x768xf32>
    %c18_i32_18 = arith.constant 18 : i32
    %44 = tpu.dynamic_rotate %41 by %c18_i32_18 dim 1 : vector<8x768xf32>, i32 -> vector<8x768xf32>
    %c17_i32_19 = arith.constant 17 : i32
    %45 = tpu.dynamic_rotate %41 by %c17_i32_19 dim 1 : vector<8x768xf32>, i32 -> vector<8x768xf32>
    %c1_i32_20 = arith.constant 1 : i32
    %46 = tpu.dynamic_rotate %41 by %c1_i32_20 dim 1 : vector<8x768xf32>, i32 -> vector<8x768xf32>
    %c767_i32_21 = arith.constant 767 : i32
    %47 = tpu.dynamic_rotate %41 by %c767_i32_21 dim 1 : vector<8x768xf32>, i32 -> vector<8x768xf32>
    %c751_i32_22 = arith.constant 751 : i32
    %48 = tpu.dynamic_rotate %41 by %c751_i32_22 dim 1 : vector<8x768xf32>, i32 -> vector<8x768xf32>
    %c750_i32_23 = arith.constant 750 : i32
    %49 = tpu.dynamic_rotate %41 by %c750_i32_23 dim 1 : vector<8x768xf32>, i32 -> vector<8x768xf32>
    %c749_i32_24 = arith.constant 749 : i32
    %50 = tpu.dynamic_rotate %41 by %c749_i32_24 dim 1 : vector<8x768xf32>, i32 -> vector<8x768xf32>
    %51 = tpu.concatenate %43, %44, %45, %46, %41, %47, %48, %49, %50 in 0 : vector<8x768xf32>, vector<8x768xf32>, vector<8x768xf32>, vector<8x768xf32>, vector<8x768xf32>, vector<8x768xf32>, vector<8x768xf32>, vector<8x768xf32>, vector<8x768xf32> -> vector<72x768xf32>
    %cst_25 = arith.constant dense<0.000000e+00> : vector<8x768xf32>
    %52 = tpu.matmul %42, %51, %cst_25 {dimension_numbers = #tpu.dot_dimension_numbers<[1], [0], [0], [1], [0, 0, 1, 1], [], []>} : vector<8x72xf32>, vector<72x768xf32>, vector<8x768xf32> -> vector<8x768xf32>
    %c0_26 = arith.constant 0 : index
    %c0_27 = arith.constant 0 : index
    %53 = vector.load %arg6[%c0_26, %c0_27] : memref<8x1xf32, #tpu.memory_space<vmem>>, vector<8x1xf32>
    %c0_28 = arith.constant 0 : index
    %c0_29 = arith.constant 0 : index
    %54 = vector.load %arg7[%c0_28, %c0_29] : memref<8x1xf32, #tpu.memory_space<vmem>>, vector<8x1xf32>
    %55 = vector.broadcast %1 : vector<1x768xf32> to vector<8x768xf32>
    %56 = arith.mulf %52, %55 : vector<8x768xf32>
    %cst_30 = arith.constant dense<0.000000e+00> : vector<8xf32>
    %57 = vector.multi_reduction <add>, %56, %cst_30 [1] : vector<8x768xf32> to vector<8xf32>
    %58 = vector.shape_cast %57 : vector<8xf32> to vector<8x1xf32>
    %cst_31 = arith.constant 0.001953125 : f32
    %59 = vector.broadcast %cst_31 : f32 to vector<8x1xf32>
    %60 = arith.mulf %58, %59 : vector<8x1xf32>
    %61 = vector.broadcast %60 : vector<8x1xf32> to vector<8x768xf32>
    %62 = arith.subf %52, %61 : vector<8x768xf32>
    %63 = vector.broadcast %1 : vector<1x768xf32> to vector<8x768xf32>
    %64 = arith.mulf %62, %63 : vector<8x768xf32>
    %65 = arith.mulf %64, %64 : vector<8x768xf32>
    %cst_32 = arith.constant dense<0.000000e+00> : vector<8xf32>
    %66 = vector.multi_reduction <add>, %65, %cst_32 [1] : vector<8x768xf32> to vector<8xf32>
    %67 = vector.shape_cast %66 : vector<8xf32> to vector<8x1xf32>
    %cst_33 = arith.constant 0.001953125 : f32
    %68 = vector.broadcast %cst_33 : f32 to vector<8x1xf32>
    %69 = arith.mulf %67, %68 : vector<8x1xf32>
    %cst_34 = arith.constant 9.99999974E-6 : f32
    %70 = vector.broadcast %cst_34 : f32 to vector<8x1xf32>
    %71 = arith.addf %69, %70 : vector<8x1xf32>
    %72 = math.rsqrt %71 : vector<8x1xf32>
    %73 = arith.mulf %53, %72 : vector<8x1xf32>
    %74 = vector.broadcast %73 : vector<8x1xf32> to vector<8x768xf32>
    %75 = arith.mulf %64, %74 : vector<8x768xf32>
    %76 = vector.broadcast %54 : vector<8x1xf32> to vector<8x768xf32>
    %77 = arith.addf %75, %76 : vector<8x768xf32>
    %78 = arith.addf %77, %0 : vector<8x768xf32>
    %cst_35 = arith.constant 0.000000e+00 : f32
    %79 = vector.broadcast %cst_35 : f32 to vector<8x768xf32>
    %80 = arith.maximumf %78, %79 : vector<8x768xf32>
    %81 = vector.broadcast %1 : vector<1x768xf32> to vector<8x768xf32>
    %82 = arith.mulf %80, %81 : vector<8x768xf32>
    %c0_36 = arith.constant 0 : index
    %c0_37 = arith.constant 0 : index
    %83 = vector.load %arg8[%c0_36, %c0_37] : memref<8x768xf32, #tpu.memory_space<vmem>>, vector<8x768xf32>
    tpu.vector_store %arg8[%c0_36, %c0_37], %82 {strides = array<i32>} : memref<8x768xf32, #tpu.memory_space<vmem>>, vector<8x768xf32>,
    return
  }
}

</mosaic_0001>

<llo_original>
// kernel: tpu_custom_call.1
$region0: #{tpu_custom_call.1}
  #allocation0 [shape = 'u32[]', space=smem, size = 0x4, offset = 0x4, fixed_abs, tag = 'smem constant byte address 0x4 - core index']
  #allocation1 [shape = 'u32[144,128]{1,0:T(1,128)}', space=vmem, size = 0x12000, scoped, tag = 'internal scratch']
  %s0 = inlined_call_operand.hbm [shape: f32[8,768], index: 0, kind: input, shape index: {}]
  %s1 = inlined_call_operand.vmem [shape: f32[1,768], index: 1, kind: input, shape index: {}]
  %s2 = inlined_call_operand.vmem [shape: f32[8,72], index: 2, kind: input, shape index: {}]
  %s3 = inlined_call_operand.vmem [shape: f32[8,1], index: 3, kind: input, shape index: {}]
  %s4 = inlined_call_operand.vmem [shape: f32[8,1], index: 4, kind: input, shape index: {}]
  %s5 = inlined_call_operand.vmem [shape: f32[8,72], index: 5, kind: input, shape index: {}]
  %s6 = inlined_call_operand.vmem [shape: f32[8,1], index: 6, kind: input, shape index: {}]
  %s7 = inlined_call_operand.vmem [shape: f32[8,1], index: 7, kind: input, shape index: {}]
  %s8 = inlined_call_operand.hbm [shape: f32[8,768], index: 8, kind: output, shape index: {}]
  %s9 = sld [smem:[#allocation0]]
  $region46: #{tpu_custom_call.1} parent=0
    _
  %s11 = ssub.s32 1, %s9
  %s12 = scalar_select 0, %s11, %s9
  $region1: #{tpu_custom_call.1} parent=0
    #allocation2 [shape = 'u8[24576]{0}', space=vmem, size = 0x6000, scoped, tag = 'input window, operand 0, single buffered']
    #allocation3 [shape = 's32[1]{0}', space=sflag, size = 0x4, scoped, tag = 'scoped memory for tpu_custom_call.1']
    #allocation4 [shape = 's32[1]{0}', space=sflag, size = 0x4, scoped, tag = 'scoped memory for tpu_custom_call.1']
    #allocation5 [shape = 'u8[24576]{0}', space=vmem, size = 0x6000, scoped, tag = 'output window, operand 0, single buffered']
    %13 = vsyncpa [#allocation3], 0
    %14 = vsyncpa [#allocation4], 0
    // Predicated region
    $region2: #{tpu_custom_call.1} parent=1 // pred_check
      _
    $region3: #{tpu_custom_call.1} parent=1 // pred_check_branch
      %16 = sbr.rel (0) target = $region5
    $region4: #{tpu_custom_call.1} parent=1 // pred_region
      %s18 = ssub.s32 768, 768
      %19 = vsyncadd [#allocation3], %s18
      %s21 = sshll.u32 [#allocation2], 4
      %s22 = int_to_ptr.vmem [resolvable:$true] %s21
      %24 = dma.hbm_to_vmem [thread:$0]  %s0, 768, %s22, [#allocation3]
    $region5: #{tpu_custom_call.1} parent=1 // pred_fallthru
      _
    // Predicated region
    $region6: #{tpu_custom_call.1} parent=1 // pred_check
      _
    $region7: #{tpu_custom_call.1} parent=1 // pred_check_branch
      %26 = sbr.rel (0) target = $region9
    $region8: #{tpu_custom_call.1} parent=1 // pred_region
      _
    $region9: #{tpu_custom_call.1} parent=1 // pred_fallthru
      _
    // Predicated region
    $region10: #{tpu_custom_call.1} parent=1 // pred_check
      _
    $region11: #{tpu_custom_call.1} parent=1 // pred_check_branch
      %28 = sbr.rel (0) target = $region13
    $region12: #{tpu_custom_call.1} parent=1 // pred_region
      _
    $region13: #{tpu_custom_call.1} parent=1 // pred_fallthru
      _
    // Predicated region
    $region14: #{tpu_custom_call.1} parent=1 // pred_check
      _
    $region15: #{tpu_custom_call.1} parent=1 // pred_check_branch
      %30 = sbr.rel (0) target = $region17
    $region16: #{tpu_custom_call.1} parent=1 // pred_region
      _
    $region17: #{tpu_custom_call.1} parent=1 // pred_fallthru
      _
    // Predicated region
    $region18: #{tpu_custom_call.1} parent=1 // pred_check
      _
    $region19: #{tpu_custom_call.1} parent=1 // pred_check_branch
      %32 = sbr.rel (0) target = $region21
    $region20: #{tpu_custom_call.1} parent=1 // pred_region
      _
    $region21: #{tpu_custom_call.1} parent=1 // pred_fallthru
      _
    // Predicated region
    $region22: #{tpu_custom_call.1} parent=1 // pred_check
      _
    $region23: #{tpu_custom_call.1} parent=1 // pred_check_branch
      %34 = sbr.rel (0) target = $region25
    $region24: #{tpu_custom_call.1} parent=1 // pred_region
      _
    $region25: #{tpu_custom_call.1} parent=1 // pred_fallthru
      _
    // Predicated region
    $region26: #{tpu_custom_call.1} parent=1 // pred_check
      _
    $region27: #{tpu_custom_call.1} parent=1 // pred_check_branch
      %36 = sbr.rel (0) target = $region29
    $region28: #{tpu_custom_call.1} parent=1 // pred_region
      _
    $region29: #{tpu_custom_call.1} parent=1 // pred_fallthru
      _
    // Predicated region
    $region30: #{tpu_custom_call.1} parent=1 // pred_check
      _
    $region31: #{tpu_custom_call.1} parent=1 // pred_check_branch
      %38 = sbr.rel (0) target = $region33
    $region32: #{tpu_custom_call.1} parent=1 // pred_region
      _
    $region33: #{tpu_custom_call.1} parent=1 // pred_fallthru
      _
    // Predicated region
    $region34: #{tpu_custom_call.1} parent=1 // pred_check
      _
    $region35: #{tpu_custom_call.1} parent=1 // pred_check_branch
      %40 = sbr.rel (0) target = $region37
    $region36: #{tpu_custom_call.1} parent=1 // pred_region
      %41 = dma.done [#allocation3], 768
    $region37: #{tpu_custom_call.1} parent=1 // pred_fallthru
      _
    %v42 = vld [vmem:[#allocation2] sm:$0xff]
    %v43 = vld [vmem:[#allocation2 + $0x8] sm:$0xff]
    %v44 = vld [vmem:[#allocation2 + $0x10] sm:$0xff]
    %v45 = vld [vmem:[#allocation2 + $0x18] sm:$0xff]
    %v46 = vld [vmem:[#allocation2 + $0x20] sm:$0xff]
    %v47 = vld [vmem:[#allocation2 + $0x28] sm:$0xff]
    %v48 = vld [vmem:[%s1] sm:$0x3f]
    %v49 = vld [vmem:[%s2] sm:$0xff]
    %50 = vrot.lane.b32.xlu0 %v42, 19
    %v51 = vpop.permute.xlu0 %50
    %52 = vrot.lane.b32.xlu0 %v43, 19
    %v53 = vpop.permute.xlu0 %52
    %54 = vrot.lane.b32.xlu0 %v44, 19
    %v55 = vpop.permute.xlu0 %54
    %56 = vrot.lane.b32.xlu0 %v45, 19
    %v57 = vpop.permute.xlu0 %56
    %58 = vrot.lane.b32.xlu0 %v46, 19
    %v59 = vpop.permute.xlu0 %58
    %60 = vrot.lane.b32.xlu0 %v47, 19
    %v61 = vpop.permute.xlu0 %60
    %v62 = vlaneseq
    %v63 = vand.u32 %v62, 127
    %vm64 = vcmp.lt.s32.totalorder %v63, 19
    %v65 = vsel %vm64, %v59, %v61
    %v66 = vsel %vm64, %v57, %v59
    %v67 = vsel %vm64, %v55, %v57
    %v68 = vsel %vm64, %v53, %v55
    %v69 = vsel %vm64, %v51, %v53
    %v70 = vsel %vm64, %v61, %v51
    %71 = vrot.lane.b32.xlu0 %v42, 18
    %v72 = vpop.permute.xlu0 %71
    %73 = vrot.lane.b32.xlu0 %v43, 18
    %v74 = vpop.permute.xlu0 %73
    %75 = vrot.lane.b32.xlu0 %v44, 18
    %v76 = vpop.permute.xlu0 %75
    %77 = vrot.lane.b32.xlu0 %v45, 18
    %v78 = vpop.permute.xlu0 %77
    %79 = vrot.lane.b32.xlu0 %v46, 18
    %v80 = vpop.permute.xlu0 %79
    %81 = vrot.lane.b32.xlu0 %v47, 18
    %v82 = vpop.permute.xlu0 %81
    %vm83 = vcmp.lt.s32.totalorder %v63, 18
    %v84 = vsel %vm83, %v80, %v82
    %v85 = vsel %vm83, %v78, %v80
    %v86 = vsel %vm83, %v76, %v78
    %v87 = vsel %vm83, %v74, %v76
    %v88 = vsel %vm83, %v72, %v74
    %v89 = vsel %vm83, %v82, %v72
    %90 = vrot.lane.b32.xlu0 %v42, 17
    %v91 = vpop.permute.xlu0 %90
    %92 = vrot.lane.b32.xlu0 %v43, 17
    %v93 = vpop.permute.xlu0 %92
    %94 = vrot.lane.b32.xlu0 %v44, 17
    %v95 = vpop.permute.xlu0 %94
    %96 = vrot.lane.b32.xlu0 %v45, 17
    %v97 = vpop.permute.xlu0 %96
    %98 = vrot.lane.b32.xlu0 %v46, 17
    %v99 = vpop.permute.xlu0 %98
    %100 = vrot.lane.b32.xlu0 %v47, 17
    %v101 = vpop.permute.xlu0 %100
    %vm102 = vcmp.lt.s32.totalorder %v63, 17
    %v103 = vsel %vm102, %v99, %v101
    %v104 = vsel %vm102, %v97, %v99
    %v105 = vsel %vm102, %v95, %v97
    %v106 = vsel %vm102, %v93, %v95
    %v107 = vsel %vm102, %v91, %v93
    %v108 = vsel %vm102, %v101, %v91
    %109 = vrot.lane.b32.xlu0 %v42, 1
    %v110 = vpop.permute.xlu0 %109
    %111 = vrot.lane.b32.xlu0 %v43, 1
    %v112 = vpop.permute.xlu0 %111
    %113 = vrot.lane.b32.xlu0 %v44, 1
    %v114 = vpop.permute.xlu0 %113
    %115 = vrot.lane.b32.xlu0 %v45, 1
    %v116 = vpop.permute.xlu0 %115
    %117 = vrot.lane.b32.xlu0 %v46, 1
    %v118 = vpop.permute.xlu0 %117
    %119 = vrot.lane.b32.xlu0 %v47, 1
    %v120 = vpop.permute.xlu0 %119
    %vm121 = vcmp.lt.s32.totalorder %v63, 1
    %v122 = vsel %vm121, %v118, %v120
    %v123 = vsel %vm121, %v116, %v118
    %v124 = vsel %vm121, %v114, %v116
    %v125 = vsel %vm121, %v112, %v114
    %v126 = vsel %vm121, %v110, %v112
    %v127 = vsel %vm121, %v120, %v110
    %128 = vrot.lane.b32.xlu0 %v42, 127
    %v129 = vpop.permute.xlu0 %128
    %130 = vrot.lane.b32.xlu0 %v43, 127
    %v131 = vpop.permute.xlu0 %130
    %132 = vrot.lane.b32.xlu0 %v44, 127
    %v133 = vpop.permute.xlu0 %132
    %134 = vrot.lane.b32.xlu0 %v45, 127
    %v135 = vpop.permute.xlu0 %134
    %136 = vrot.lane.b32.xlu0 %v46, 127
    %v137 = vpop.permute.xlu0 %136
    %138 = vrot.lane.b32.xlu0 %v47, 127
    %v139 = vpop.permute.xlu0 %138
    %vm140 = vcmp.lt.s32.totalorder %v63, 127
    %v141 = vsel %vm140, %v137, %v139
    %v142 = vsel %vm140, %v135, %v137
    %v143 = vsel %vm140, %v133, %v135
    %v144 = vsel %vm140, %v131, %v133
    %v145 = vsel %vm140, %v129, %v131
    %v146 = vsel %vm140, %v139, %v129
    %147 = vrot.lane.b32.xlu0 %v42, 111
    %v148 = vpop.permute.xlu0 %147
    %149 = vrot.lane.b32.xlu0 %v43, 111
    %v150 = vpop.permute.xlu0 %149
    %151 = vrot.lane.b32.xlu0 %v44, 111
    %v152 = vpop.permute.xlu0 %151
    %153 = vrot.lane.b32.xlu0 %v45, 111
    %v154 = vpop.permute.xlu0 %153
    %155 = vrot.lane.b32.xlu0 %v46, 111
    %v156 = vpop.permute.xlu0 %155
    %157 = vrot.lane.b32.xlu0 %v47, 111
    %v158 = vpop.permute.xlu0 %157
    %vm159 = vcmp.lt.s32.totalorder %v63, 111
    %v160 = vsel %vm159, %v156, %v158
    %v161 = vsel %vm159, %v154, %v156
    %v162 = vsel %vm159, %v152, %v154
    %v163 = vsel %vm159, %v150, %v152
    %v164 = vsel %vm159, %v148, %v150
    %v165 = vsel %vm159, %v158, %v148
    %166 = vrot.lane.b32.xlu0 %v42, 110
    %v167 = vpop.permute.xlu0 %166
    %168 = vrot.lane.b32.xlu0 %v43, 110
    %v169 = vpop.permute.xlu0 %168
    %170 = vrot.lane.b32.xlu0 %v44, 110
    %v171 = vpop.permute.xlu0 %170
    %172 = vrot.lane.b32.xlu0 %v45, 110
    %v173 = vpop.permute.xlu0 %172
    %174 = vrot.lane.b32.xlu0 %v46, 110
    %v175 = vpop.permute.xlu0 %174
    %176 = vrot.lane.b32.xlu0 %v47, 110
    %v177 = vpop.permute.xlu0 %176
    %vm178 = vcmp.lt.s32.totalorder %v63, 110
    %v179 = vsel %vm178, %v175, %v177
    %v180 = vsel %vm178, %v173, %v175
    %v181 = vsel %vm178, %v171, %v173
    %v182 = vsel %vm178, %v169, %v171
    %v183 = vsel %vm178, %v167, %v169
    %v184 = vsel %vm178, %v177, %v167
    %185 = vrot.lane.b32.xlu0 %v42, 109
    %v186 = vpop.permute.xlu0 %185
    %187 = vrot.lane.b32.xlu0 %v43, 109
    %v188 = vpop.permute.xlu0 %187
    %189 = vrot.lane.b32.xlu0 %v44, 109
    %v190 = vpop.permute.xlu0 %189
    %191 = vrot.lane.b32.xlu0 %v45, 109
    %v192 = vpop.permute.xlu0 %191
    %193 = vrot.lane.b32.xlu0 %v46, 109
    %v194 = vpop.permute.xlu0 %193
    %195 = vrot.lane.b32.xlu0 %v47, 109
    %v196 = vpop.permute.xlu0 %195
    %vm197 = vcmp.lt.s32.totalorder %v63, 109
    %v198 = vsel %vm197, %v194, %v196
    %v199 = vsel %vm197, %v192, %v194
    %v200 = vsel %vm197, %v190, %v192
    %v201 = vsel %vm197, %v188, %v190
    %v202 = vsel %vm197, %v186, %v188
    %v203 = vsel %vm197, %v196, %v186
    %vm204 = vcmask 588800
    %v206 = vsel %vm204, %v49, 0
    %208 = vmatprep.subr.mxu0 %v69
    %209 = vmatpush1.msra.mxu0 %v70
    %210 = vmatprep.subr.mxu0 %v88
    %211 = vmatpush1.msra.mxu0 %v89
    %212 = vmatprep.subr.mxu0 %v107
    %213 = vmatpush1.msra.mxu0 %v108
    %214 = vmatprep.subr.mxu0 %v126
    %215 = vmatpush1.msra.mxu0 %v127
    %216 = vmatprep.subr.mxu0 %v43
    %217 = vmatpush1.msra.mxu0 %v42
    %218 = vmatprep.subr.mxu0 %v144
    %219 = vmatpush1.msra.mxu0 %v145
    %220 = vmatprep.subr.mxu0 %v163
    %221 = vmatpush1.msra.mxu0 %v164
    %222 = vmatprep.subr.mxu0 %v182
    %223 = vmatpush1.msra.mxu0 %v183
    %224 = vmatprep.subr.mxu0 %v201
    %225 = vmatpush1.msra.mxu0 %v202
    %226 = vmatprep.subr.mxu0 0.0
    %227 = vmatpush1.msra.mxu0 0.0
    %228 = vmatprep.subr.mxu0 0.0
    %229 = vmatpush1.msra.mxu0 0.0
    %230 = vmatprep.subr.mxu0 0.0
    %231 = vmatpush1.msra.mxu0 0.0
    %232 = vmatprep.subr.mxu0 0.0
    %233 = vmatpush1.msra.mxu0 0.0
    %234 = vmatprep.subr.mxu0 0.0
    %235 = vmatpush1.msra.mxu0 0.0
    %236 = vmatprep.subr.mxu0 0.0
    %237 = vmatpush1.msra.mxu0 0.0
    %238 = vmatprep.subr.mxu0 0.0
    %239 = vmatpush1.msra.mxu0 0.0
    %240 = vmatprep.subr.mxu0 0.0
    %241 = vmatpush1.msra.mxu0 0.0
    %242 = vmatprep.subr.mxu0 0.0
    %243 = vmatpush1.msra.mxu0 0.0
    %244 = vmatprep.subr.mxu0 0.0
    %245 = vmatpush1.msra.mxu0 0.0
    %246 = vmatprep.subr.mxu0 0.0
    %247 = vmatpush1.msra.mxu0 0.0
    %248 = vmatprep.subr.mxu0 0.0
    %249 = vmatpush1.msra.mxu0 0.0
    %250 = vmatprep.subr.mxu0 0.0
    %251 = vmatpush1.msra.mxu0 0.0
    %252 = vmatprep.subr.mxu0 0.0
    %253 = vmatpush1.msra.mxu0 0.0
    %254 = vmatprep.subr.mxu0 0.0
    %255 = vmatpush1.msra.mxu0 0.0
    %256 = vmatprep.subr.mxu0 0.0
    %257 = vmatpush1.msra.mxu0 0.0
    %258 = vmatprep.subr.mxu0 0.0
    %259 = vmatpush1.msra.mxu0 0.0
    %260 = vmatprep.subr.mxu0 0.0
    %261 = vmatpush1.msra.mxu0 0.0
    %262 = vmatprep.subr.mxu0 0.0
    %263 = vmatpush1.msra.mxu0 0.0
    %264 = vmatprep.subr.mxu0 0.0
    %265 = vmatpush1.msra.mxu0 0.0
    %266 = vmatprep.subr.mxu0 0.0
    %267 = vmatpush1.msra.mxu0 0.0
    %268 = vmatprep.subr.mxu0 0.0
    %269 = vmatpush1.msra.mxu0 0.0
    %270 = vmatprep.subr.mxu0 0.0
    %271 = vmatpush1.msra.mxu0 0.0
    %272 = vmatprep.mubr.f32.mxu0 0.0
    %273 = vmatmul.mubr.f32.gmra.mrb[0].mxu0 %v206
    %v274 = vpop.f32.mrb[0].mxu0
    %v275 = vadd.f32 0.0, %v274
    %v276 = vpop.f32.mrb[0].mxu0
    %v277 = vadd.f32 0.0, %v276
    %278 = vdwg.mxu0
    %279 = vmatprep.subr.mxu0 %v67
    %280 = vmatpush1.msra.mxu0 %v68
    %281 = vmatprep.subr.mxu0 %v86
    %282 = vmatpush1.msra.mxu0 %v87
    %283 = vmatprep.subr.mxu0 %v105
    %284 = vmatpush1.msra.mxu0 %v106
    %285 = vmatprep.subr.mxu0 %v124
    %286 = vmatpush1.msra.mxu0 %v125
    %287 = vmatprep.subr.mxu0 %v45
    %288 = vmatpush1.msra.mxu0 %v44
    %289 = vmatprep.subr.mxu0 %v142
    %290 = vmatpush1.msra.mxu0 %v143
    %291 = vmatprep.subr.mxu0 %v161
    %292 = vmatpush1.msra.mxu0 %v162
    %293 = vmatprep.subr.mxu0 %v180
    %294 = vmatpush1.msra.mxu0 %v181
    %295 = vmatprep.subr.mxu0 %v199
    %296 = vmatpush1.msra.mxu0 %v200
    %297 = vmatprep.subr.mxu0 0.0
    %298 = vmatpush1.msra.mxu0 0.0
    %299 = vmatprep.subr.mxu0 0.0
    %300 = vmatpush1.msra.mxu0 0.0
    %301 = vmatprep.subr.mxu0 0.0
    %302 = vmatpush1.msra.mxu0 0.0
    %303 = vmatprep.subr.mxu0 0.0
    %304 = vmatpush1.msra.mxu0 0.0
    %305 = vmatprep.subr.mxu0 0.0
    %306 = vmatpush1.msra.mxu0 0.0
    %307 = vmatprep.subr.mxu0 0.0
    %308 = vmatpush1.msra.mxu0 0.0
    %309 = vmatprep.subr.mxu0 0.0
    %310 = vmatpush1.msra.mxu0 0.0
    %311 = vmatprep.subr.mxu0 0.0
    %312 = vmatpush1.msra.mxu0 0.0
    %313 = vmatprep.subr.mxu0 0.0
    %314 = vmatpush1.msra.mxu0 0.0
    %315 = vmatprep.subr.mxu0 0.0
    %316 = vmatpush1.msra.mxu0 0.0
    %317 = vmatprep.subr.mxu0 0.0
    %318 = vmatpush1.msra.mxu0 0.0
    %319 = vmatprep.subr.mxu0 0.0
    %320 = vmatpush1.msra.mxu0 0.0
    %321 = vmatprep.subr.mxu0 0.0
    %322 = vmatpush1.msra.mxu0 0.0
    %323 = vmatprep.subr.mxu0 0.0
    %324 = vmatpush1.msra.mxu0 0.0
    %325 = vmatprep.subr.mxu0 0.0
    %326 = vmatpush1.msra.mxu0 0.0
    %327 = vmatprep.subr.mxu0 0.0
    %328 = vmatpush1.msra.mxu0 0.0
    %329 = vmatprep.subr.mxu0 0.0
    %330 = vmatpush1.msra.mxu0 0.0
    %331 = vmatprep.subr.mxu0 0.0
    %332 = vmatpush1.msra.mxu0 0.0
    %333 = vmatprep.subr.mxu0 0.0
    %334 = vmatpush1.msra.mxu0 0.0
    %335 = vmatprep.subr.mxu0 0.0
    %336 = vmatpush1.msra.mxu0 0.0
    %337 = vmatprep.subr.mxu0 0.0
    %338 = vmatpush1.msra.mxu0 0.0
    %339 = vmatprep.subr.mxu0 0.0
    %340 = vmatpush1.msra.mxu0 0.0
    %341 = vmatprep.subr.mxu0 0.0
    %342 = vmatpush1.msra.mxu0 0.0
    %343 = vmatprep.mubr.f32.mxu0 0.0
    %344 = vmatmul.mubr.f32.gmra.mrb[0].mxu0 %v206
    %v345 = vpop.f32.mrb[0].mxu0
    %v346 = vadd.f32 0.0, %v345
    %v347 = vpop.f32.mrb[0].mxu0
    %v348 = vadd.f32 0.0, %v347
    %349 = vdwg.mxu0
    %350 = vmatprep.subr.mxu0 %v65
    %351 = vmatpush1.msra.mxu0 %v66
    %352 = vmatprep.subr.mxu0 %v84
    %353 = vmatpush1.msra.mxu0 %v85
    %354 = vmatprep.subr.mxu0 %v103
    %355 = vmatpush1.msra.mxu0 %v104
    %356 = vmatprep.subr.mxu0 %v122
    %357 = vmatpush1.msra.mxu0 %v123
    %358 = vmatprep.subr.mxu0 %v47
    %359 = vmatpush1.msra.mxu0 %v46
    %360 = vmatprep.subr.mxu0 %v146
    %361 = vmatpush1.msra.mxu0 %v141
    %362 = vmatprep.subr.mxu0 %v165
    %363 = vmatpush1.msra.mxu0 %v160
    %364 = vmatprep.subr.mxu0 %v184
    %365 = vmatpush1.msra.mxu0 %v179
    %366 = vmatprep.subr.mxu0 %v203
    %367 = vmatpush1.msra.mxu0 %v198
    %368 = vmatprep.subr.mxu0 0.0
    %369 = vmatpush1.msra.mxu0 0.0
    %370 = vmatprep.subr.mxu0 0.0
    %371 = vmatpush1.msra.mxu0 0.0
    %372 = vmatprep.subr.mxu0 0.0
    %373 = vmatpush1.msra.mxu0 0.0
    %374 = vmatprep.subr.mxu0 0.0
    %375 = vmatpush1.msra.mxu0 0.0
    %376 = vmatprep.subr.mxu0 0.0
    %377 = vmatpush1.msra.mxu0 0.0
    %378 = vmatprep.subr.mxu0 0.0
    %379 = vmatpush1.msra.mxu0 0.0
    %380 = vmatprep.subr.mxu0 0.0
    %381 = vmatpush1.msra.mxu0 0.0
    %382 = vmatprep.subr.mxu0 0.0
    %383 = vmatpush1.msra.mxu0 0.0
    %384 = vmatprep.subr.mxu0 0.0
    %385 = vmatpush1.msra.mxu0 0.0
    %386 = vmatprep.subr.mxu0 0.0
    %387 = vmatpush1.msra.mxu0 0.0
    %388 = vmatprep.subr.mxu0 0.0
    %389 = vmatpush1.msra.mxu0 0.0
    %390 = vmatprep.subr.mxu0 0.0
    %391 = vmatpush1.msra.mxu0 0.0
    %392 = vmatprep.subr.mxu0 0.0
    %393 = vmatpush1.msra.mxu0 0.0
    %394 = vmatprep.subr.mxu0 0.0
    %395 = vmatpush1.msra.mxu0 0.0
    %396 = vmatprep.subr.mxu0 0.0
    %397 = vmatpush1.msra.mxu0 0.0
    %398 = vmatprep.subr.mxu0 0.0
    %399 = vmatpush1.msra.mxu0 0.0
    %400 = vmatprep.subr.mxu0 0.0
    %401 = vmatpush1.msra.mxu0 0.0
    %402 = vmatprep.subr.mxu0 0.0
    %403 = vmatpush1.msra.mxu0 0.0
    %404 = vmatprep.subr.mxu0 0.0
    %405 = vmatpush1.msra.mxu0 0.0
    %406 = vmatprep.subr.mxu0 0.0
    %407 = vmatpush1.msra.mxu0 0.0
    %408 = vmatprep.subr.mxu0 0.0
    %409 = vmatpush1.msra.mxu0 0.0
    %410 = vmatprep.subr.mxu0 0.0
    %411 = vmatpush1.msra.mxu0 0.0
    %412 = vmatprep.subr.mxu0 0.0
    %413 = vmatpush1.msra.mxu0 0.0
    %414 = vmatprep.mubr.f32.mxu0 0.0
    %415 = vmatmul.mubr.f32.gmra.mrb[0].mxu0 %v206
    %v416 = vpop.f32.mrb[0].mxu0
    %v417 = vadd.f32 0.0, %v416
    %v418 = vpop.f32.mrb[0].mxu0
    %v419 = vadd.f32 0.0, %v418
    %420 = vdwg.mxu0
    %v421 = vld [vmem:[%s3] sm:$0xff]
    %v422 = vld [vmem:[%s4] sm:$0xff]
    %v424 = vlaneseq
    %v425 = vshrl.u32 %v424, 7
    %v426 = vsub.s32 0, %v425
    %v427 = vrot.slane %v48, %v426
    %v428 = vlaneseq
    %v429 = vshrl.u32 %v428, 7
    %v430 = vsub.s32 1, %v429
    %v431 = vrot.slane %v48, %v430
    %v432 = vlaneseq
    %v433 = vshrl.u32 %v432, 7
    %v434 = vsub.s32 2, %v433
    %v435 = vrot.slane %v48, %v434
    %v436 = vlaneseq
    %v437 = vshrl.u32 %v436, 7
    %v438 = vsub.s32 3, %v437
    %v439 = vrot.slane %v48, %v438
    %v440 = vlaneseq
    %v441 = vshrl.u32 %v440, 7
    %v442 = vsub.s32 4, %v441
    %v443 = vrot.slane %v48, %v442
    %v444 = vlaneseq
    %v445 = vshrl.u32 %v444, 7
    %v446 = vsub.s32 5, %v445
    %v447 = vrot.slane %v48, %v446
    %v454 = vmul.f32 %v275, %v427
    %v455 = vmul.f32 %v277, %v431
    %v456 = vmul.f32 %v346, %v435
    %v457 = vmul.f32 %v348, %v439
    %v458 = vmul.f32 %v417, %v443
    %v459 = vmul.f32 %v419, %v447
    %v460 = vadd.f32 %v454, %v455
    %v461 = vadd.f32 %v460, %v456
    %v462 = vadd.f32 %v461, %v457
    %v463 = vadd.f32 %v462, %v458
    %v464 = vadd.f32 %v463, %v459
    %465 = vadd.xlane.f32.xlu0 %v464
    %v466 = vpop.xlane.xlu0 %465
    %v467 = vmul.f32 %v466, 0.001953125
    %v468 = vsub.f32 %v275, %v467
    %v469 = vsub.f32 %v277, %v467
    %v470 = vsub.f32 %v346, %v467
    %v471 = vsub.f32 %v348, %v467
    %v472 = vsub.f32 %v417, %v467
    %v473 = vsub.f32 %v419, %v467
    %v474 = vmul.f32 %v468, %v427
    %v475 = vmul.f32 %v469, %v431
    %v476 = vmul.f32 %v470, %v435
    %v477 = vmul.f32 %v471, %v439
    %v478 = vmul.f32 %v472, %v443
    %v479 = vmul.f32 %v473, %v447
    %v480 = vmul.f32 %v474, %v474
    %v481 = vmul.f32 %v475, %v475
    %v482 = vmul.f32 %v476, %v476
    %v483 = vmul.f32 %v477, %v477
    %v484 = vmul.f32 %v478, %v478
    %v485 = vmul.f32 %v479, %v479
    %v486 = vadd.f32 %v480, %v481
    %v487 = vadd.f32 %v486, %v482
    %v488 = vadd.f32 %v487, %v483
    %v489 = vadd.f32 %v488, %v484
    %v490 = vadd.f32 %v489, %v485
    %491 = vadd.xlane.f32.xlu0 %v490
    %v492 = vpop.xlane.xlu0 %491
    %v493 = vmul.f32 %v492, 0.001953125
    %v494 = vadd.f32 %v493, 1e-05
    %v495 = vrsqrt.pop %v494
    %v496 = vmul.f32 %v421, %v495
    %498 = vset.pattern.permute.xlu0 0
    %499 = vperm.xlu0 %498, %v496
    %v500 = vpop.permute.xlu0 %499
    %v502 = vmul.f32 %v474, %v500
    %v503 = vmul.f32 %v475, %v500
    %v504 = vmul.f32 %v476, %v500
    %v505 = vmul.f32 %v477, %v500
    %v506 = vmul.f32 %v478, %v500
    %v507 = vmul.f32 %v479, %v500
    %509 = vset.pattern.permute.xlu0 0
    %510 = vperm.xlu0 %509, %v422
    %v511 = vpop.permute.xlu0 %510
    %v513 = vadd.f32 %v502, %v511
    %v514 = vadd.f32 %v503, %v511
    %v515 = vadd.f32 %v504, %v511
    %v516 = vadd.f32 %v505, %v511
    %v517 = vadd.f32 %v506, %v511
    %v518 = vadd.f32 %v507, %v511
    %v519 = vmax.f32 %v513, 0.0
    %v520 = vmax.f32 %v514, 0.0
    %v521 = vmax.f32 %v515, 0.0
    %v522 = vmax.f32 %v516, 0.0
    %v523 = vmax.f32 %v517, 0.0
    %v524 = vmax.f32 %v518, 0.0
    %v525 = vmul.f32 %v519, %v427
    %v526 = vmul.f32 %v520, %v431
    %v527 = vmul.f32 %v521, %v435
    %v528 = vmul.f32 %v522, %v439
    %v529 = vmul.f32 %v523, %v443
    %v530 = vmul.f32 %v524, %v447
    %v531 = vld [vmem:[%s5] sm:$0xff]
    %532 = vrot.lane.b32.xlu0 %v525, 19
    %v533 = vpop.permute.xlu0 %532
    %534 = vrot.lane.b32.xlu0 %v526, 19
    %v535 = vpop.permute.xlu0 %534
    %536 = vrot.lane.b32.xlu0 %v527, 19
    %v537 = vpop.permute.xlu0 %536
    %538 = vrot.lane.b32.xlu0 %v528, 19
    %v539 = vpop.permute.xlu0 %538
    %540 = vrot.lane.b32.xlu0 %v529, 19
    %v541 = vpop.permute.xlu0 %540
    %542 = vrot.lane.b32.xlu0 %v530, 19
    %v543 = vpop.permute.xlu0 %542
    %v544 = vsel %vm64, %v541, %v543
    %v545 = vsel %vm64, %v539, %v541
    %v546 = vsel %vm64, %v537, %v539
    %v547 = vsel %vm64, %v535, %v537
    %v548 = vsel %vm64, %v533, %v535
    %v549 = vsel %vm64, %v543, %v533
    %550 = vrot.lane.b32.xlu0 %v525, 18
    %v551 = vpop.permute.xlu0 %550
    %552 = vrot.lane.b32.xlu0 %v526, 18
    %v553 = vpop.permute.xlu0 %552
    %554 = vrot.lane.b32.xlu0 %v527, 18
    %v555 = vpop.permute.xlu0 %554
    %556 = vrot.lane.b32.xlu0 %v528, 18
    %v557 = vpop.permute.xlu0 %556
    %558 = vrot.lane.b32.xlu0 %v529, 18
    %v559 = vpop.permute.xlu0 %558
    %560 = vrot.lane.b32.xlu0 %v530, 18
    %v561 = vpop.permute.xlu0 %560
    %v562 = vsel %vm83, %v559, %v561
    %v563 = vsel %vm83, %v557, %v559
    %v564 = vsel %vm83, %v555, %v557
    %v565 = vsel %vm83, %v553, %v555
    %v566 = vsel %vm83, %v551, %v553
    %v567 = vsel %vm83, %v561, %v551
    %568 = vrot.lane.b32.xlu0 %v525, 17
    %v569 = vpop.permute.xlu0 %568
    %570 = vrot.lane.b32.xlu0 %v526, 17
    %v571 = vpop.permute.xlu0 %570
    %572 = vrot.lane.b32.xlu0 %v527, 17
    %v573 = vpop.permute.xlu0 %572
    %574 = vrot.lane.b32.xlu0 %v528, 17
    %v575 = vpop.permute.xlu0 %574
    %576 = vrot.lane.b32.xlu0 %v529, 17
    %v577 = vpop.permute.xlu0 %576
    %578 = vrot.lane.b32.xlu0 %v530, 17
    %v579 = vpop.permute.xlu0 %578
    %v580 = vsel %vm102, %v577, %v579
    %v581 = vsel %vm102, %v575, %v577
    %v582 = vsel %vm102, %v573, %v575
    %v583 = vsel %vm102, %v571, %v573
    %v584 = vsel %vm102, %v569, %v571
    %v585 = vsel %vm102, %v579, %v569
    %586 = vrot.lane.b32.xlu0 %v525, 1
    %v587 = vpop.permute.xlu0 %586
    %588 = vrot.lane.b32.xlu0 %v526, 1
    %v589 = vpop.permute.xlu0 %588
    %590 = vrot.lane.b32.xlu0 %v527, 1
    %v591 = vpop.permute.xlu0 %590
    %592 = vrot.lane.b32.xlu0 %v528, 1
    %v593 = vpop.permute.xlu0 %592
    %594 = vrot.lane.b32.xlu0 %v529, 1
    %v595 = vpop.permute.xlu0 %594
    %596 = vrot.lane.b32.xlu0 %v530, 1
    %v597 = vpop.permute.xlu0 %596
    %v598 = vsel %vm121, %v595, %v597
    %v599 = vsel %vm121, %v593, %v595
    %v600 = vsel %vm121, %v591, %v593
    %v601 = vsel %vm121, %v589, %v591
    %v602 = vsel %vm121, %v587, %v589
    %v603 = vsel %vm121, %v597, %v587
    %604 = vrot.lane.b32.xlu0 %v525, 127
    %v605 = vpop.permute.xlu0 %604
    %606 = vrot.lane.b32.xlu0 %v526, 127
    %v607 = vpop.permute.xlu0 %606
    %608 = vrot.lane.b32.xlu0 %v527, 127
    %v609 = vpop.permute.xlu0 %608
    %610 = vrot.lane.b32.xlu0 %v528, 127
    %v611 = vpop.permute.xlu0 %610
    %612 = vrot.lane.b32.xlu0 %v529, 127
    %v613 = vpop.permute.xlu0 %612
    %614 = vrot.lane.b32.xlu0 %v530, 127
    %v615 = vpop.permute.xlu0 %614
    %v616 = vsel %vm140, %v613, %v615
    %v617 = vsel %vm140, %v611, %v613
    %v618 = vsel %vm140, %v609, %v611
    %v619 = vsel %vm140, %v607, %v609
    %v620 = vsel %vm140, %v605, %v607
    %v621 = vsel %vm140, %v615, %v605
    %622 = vrot.lane.b32.xlu0 %v525, 111
    %v623 = vpop.permute.xlu0 %622
    %624 = vrot.lane.b32.xlu0 %v526, 111
    %v625 = vpop.permute.xlu0 %624
    %626 = vrot.lane.b32.xlu0 %v527, 111
    %v627 = vpop.permute.xlu0 %626
    %628 = vrot.lane.b32.xlu0 %v528, 111
    %v629 = vpop.permute.xlu0 %628
    %630 = vrot.lane.b32.xlu0 %v529, 111
    %v631 = vpop.permute.xlu0 %630
    %632 = vrot.lane.b32.xlu0 %v530, 111
    %v633 = vpop.permute.xlu0 %632
    %v634 = vsel %vm159, %v631, %v633
    %v635 = vsel %vm159, %v629, %v631
    %v636 = vsel %vm159, %v627, %v629
    %v637 = vsel %vm159, %v625, %v627
    %v638 = vsel %vm159, %v623, %v625
    %v639 = vsel %vm159, %v633, %v623
    %640 = vrot.lane.b32.xlu0 %v525, 110
    %v641 = vpop.permute.xlu0 %640
    %642 = vrot.lane.b32.xlu0 %v526, 110
    %v643 = vpop.permute.xlu0 %642
    %644 = vrot.lane.b32.xlu0 %v527, 110
    %v645 = vpop.permute.xlu0 %644
    %646 = vrot.lane.b32.xlu0 %v528, 110
    %v647 = vpop.permute.xlu0 %646
    %648 = vrot.lane.b32.xlu0 %v529, 110
    %v649 = vpop.permute.xlu0 %648
    %650 = vrot.lane.b32.xlu0 %v530, 110
    %v651 = vpop.permute.xlu0 %650
    %v652 = vsel %vm178, %v649, %v651
    %v653 = vsel %vm178, %v647, %v649
    %v654 = vsel %vm178, %v645, %v647
    %v655 = vsel %vm178, %v643, %v645
    %v656 = vsel %vm178, %v641, %v643
    %v657 = vsel %vm178, %v651, %v641
    %658 = vrot.lane.b32.xlu0 %v525, 109
    %v659 = vpop.permute.xlu0 %658
    %660 = vrot.lane.b32.xlu0 %v526, 109
    %v661 = vpop.permute.xlu0 %660
    %662 = vrot.lane.b32.xlu0 %v527, 109
    %v663 = vpop.permute.xlu0 %662
    %664 = vrot.lane.b32.xlu0 %v528, 109
    %v665 = vpop.permute.xlu0 %664
    %666 = vrot.lane.b32.xlu0 %v529, 109
    %v667 = vpop.permute.xlu0 %666
    %668 = vrot.lane.b32.xlu0 %v530, 109
    %v669 = vpop.permute.xlu0 %668
    %v670 = vsel %vm197, %v667, %v669
    %v671 = vsel %vm197, %v665, %v667
    %v672 = vsel %vm197, %v663, %v665
    %v673 = vsel %vm197, %v661, %v663
    %v674 = vsel %vm197, %v659, %v661
    %v675 = vsel %vm197, %v669, %v659
    %v677 = vsel %vm204, %v531, 0
    %679 = vmatprep.subr.mxu0 %v548
    %680 = vmatpush1.msra.mxu0 %v549
    %681 = vmatprep.subr.mxu0 %v566
    %682 = vmatpush1.msra.mxu0 %v567
    %683 = vmatprep.subr.mxu0 %v584
    %684 = vmatpush1.msra.mxu0 %v585
    %685 = vmatprep.subr.mxu0 %v602
    %686 = vmatpush1.msra.mxu0 %v603
    %687 = vmatprep.subr.mxu0 %v526
    %688 = vmatpush1.msra.mxu0 %v525
    %689 = vmatprep.subr.mxu0 %v619
    %690 = vmatpush1.msra.mxu0 %v620
    %691 = vmatprep.subr.mxu0 %v637
    %692 = vmatpush1.msra.mxu0 %v638
    %693 = vmatprep.subr.mxu0 %v655
    %694 = vmatpush1.msra.mxu0 %v656
    %695 = vmatprep.subr.mxu0 %v673
    %696 = vmatpush1.msra.mxu0 %v674
    %697 = vmatprep.subr.mxu0 0.0
    %698 = vmatpush1.msra.mxu0 0.0
    %699 = vmatprep.subr.mxu0 0.0
    %700 = vmatpush1.msra.mxu0 0.0
    %701 = vmatprep.subr.mxu0 0.0
    %702 = vmatpush1.msra.mxu0 0.0
    %703 = vmatprep.subr.mxu0 0.0
    %704 = vmatpush1.msra.mxu0 0.0
    %705 = vmatprep.subr.mxu0 0.0
    %706 = vmatpush1.msra.mxu0 0.0
    %707 = vmatprep.subr.mxu0 0.0
    %708 = vmatpush1.msra.mxu0 0.0
    %709 = vmatprep.subr.mxu0 0.0
    %710 = vmatpush1.msra.mxu0 0.0
    %711 = vmatprep.subr.mxu0 0.0
    %712 = vmatpush1.msra.mxu0 0.0
    %713 = vmatprep.subr.mxu0 0.0
    %714 = vmatpush1.msra.mxu0 0.0
    %715 = vmatprep.subr.mxu0 0.0
    %716 = vmatpush1.msra.mxu0 0.0
    %717 = vmatprep.subr.mxu0 0.0
    %718 = vmatpush1.msra.mxu0 0.0
    %719 = vmatprep.subr.mxu0 0.0
    %720 = vmatpush1.msra.mxu0 0.0
    %721 = vmatprep.subr.mxu0 0.0
    %722 = vmatpush1.msra.mxu0 0.0
    %723 = vmatprep.subr.mxu0 0.0
    %724 = vmatpush1.msra.mxu0 0.0
    %725 = vmatprep.subr.mxu0 0.0
    %726 = vmatpush1.msra.mxu0 0.0
    %727 = vmatprep.subr.mxu0 0.0
    %728 = vmatpush1.msra.mxu0 0.0
    %729 = vmatprep.subr.mxu0 0.0
    %730 = vmatpush1.msra.mxu0 0.0
    %731 = vmatprep.subr.mxu0 0.0
    %732 = vmatpush1.msra.mxu0 0.0
    %733 = vmatprep.subr.mxu0 0.0
    %734 = vmatpush1.msra.mxu0 0.0
    %735 = vmatprep.subr.mxu0 0.0
    %736 = vmatpush1.msra.mxu0 0.0
    %737 = vmatprep.subr.mxu0 0.0
    %738 = vmatpush1.msra.mxu0 0.0
    %739 = vmatprep.subr.mxu0 0.0
    %740 = vmatpush1.msra.mxu0 0.0
    %741 = vmatprep.subr.mxu0 0.0
    %742 = vmatpush1.msra.mxu0 0.0
    %743 = vmatprep.mubr.f32.mxu0 0.0
    %744 = vmatmul.mubr.f32.gmra.mrb[0].mxu0 %v677
    %v745 = vpop.f32.mrb[0].mxu0
    %v746 = vadd.f32 0.0, %v745
    %v747 = vpop.f32.mrb[0].mxu0
    %v748 = vadd.f32 0.0, %v747
    %749 = vdwg.mxu0
    %750 = vmatprep.subr.mxu0 %v546
    %751 = vmatpush1.msra.mxu0 %v547
    %752 = vmatprep.subr.mxu0 %v564
    %753 = vmatpush1.msra.mxu0 %v565
    %754 = vmatprep.subr.mxu0 %v582
    %755 = vmatpush1.msra.mxu0 %v583
    %756 = vmatprep.subr.mxu0 %v600
    %757 = vmatpush1.msra.mxu0 %v601
    %758 = vmatprep.subr.mxu0 %v528
    %759 = vmatpush1.msra.mxu0 %v527
    %760 = vmatprep.subr.mxu0 %v617
    %761 = vmatpush1.msra.mxu0 %v618
    %762 = vmatprep.subr.mxu0 %v635
    %763 = vmatpush1.msra.mxu0 %v636
    %764 = vmatprep.subr.mxu0 %v653
    %765 = vmatpush1.msra.mxu0 %v654
    %766 = vmatprep.subr.mxu0 %v671
    %767 = vmatpush1.msra.mxu0 %v672
    %768 = vmatprep.subr.mxu0 0.0
    %769 = vmatpush1.msra.mxu0 0.0
    %770 = vmatprep.subr.mxu0 0.0
    %771 = vmatpush1.msra.mxu0 0.0
    %772 = vmatprep.subr.mxu0 0.0
    %773 = vmatpush1.msra.mxu0 0.0
    %774 = vmatprep.subr.mxu0 0.0
    %775 = vmatpush1.msra.mxu0 0.0
    %776 = vmatprep.subr.mxu0 0.0
    %777 = vmatpush1.msra.mxu0 0.0
    %778 = vmatprep.subr.mxu0 0.0
    %779 = vmatpush1.msra.mxu0 0.0
    %780 = vmatprep.subr.mxu0 0.0
    %781 = vmatpush1.msra.mxu0 0.0
    %782 = vmatprep.subr.mxu0 0.0
    %783 = vmatpush1.msra.mxu0 0.0
    %784 = vmatprep.subr.mxu0 0.0
    %785 = vmatpush1.msra.mxu0 0.0
    %786 = vmatprep.subr.mxu0 0.0
    %787 = vmatpush1.msra.mxu0 0.0
    %788 = vmatprep.subr.mxu0 0.0
    %789 = vmatpush1.msra.mxu0 0.0
    %790 = vmatprep.subr.mxu0 0.0
    %791 = vmatpush1.msra.mxu0 0.0
    %792 = vmatprep.subr.mxu0 0.0
    %793 = vmatpush1.msra.mxu0 0.0
    %794 = vmatprep.subr.mxu0 0.0
    %795 = vmatpush1.msra.mxu0 0.0
    %796 = vmatprep.subr.mxu0 0.0
    %797 = vmatpush1.msra.mxu0 0.0
    %798 = vmatprep.subr.mxu0 0.0
    %799 = vmatpush1.msra.mxu0 0.0
    %800 = vmatprep.subr.mxu0 0.0
    %801 = vmatpush1.msra.mxu0 0.0
    %802 = vmatprep.subr.mxu0 0.0
    %803 = vmatpush1.msra.mxu0 0.0
    %804 = vmatprep.subr.mxu0 0.0
    %805 = vmatpush1.msra.mxu0 0.0
    %806 = vmatprep.subr.mxu0 0.0
    %807 = vmatpush1.msra.mxu0 0.0
    %808 = vmatprep.subr.mxu0 0.0
    %809 = vmatpush1.msra.mxu0 0.0
    %810 = vmatprep.subr.mxu0 0.0
    %811 = vmatpush1.msra.mxu0 0.0
    %812 = vmatprep.subr.mxu0 0.0
    %813 = vmatpush1.msra.mxu0 0.0
    %814 = vmatprep.mubr.f32.mxu0 0.0
    %815 = vmatmul.mubr.f32.gmra.mrb[0].mxu0 %v677
    %v816 = vpop.f32.mrb[0].mxu0
    %v817 = vadd.f32 0.0, %v816
    %v818 = vpop.f32.mrb[0].mxu0
    %v819 = vadd.f32 0.0, %v818
    %820 = vdwg.mxu0
    %821 = vmatprep.subr.mxu0 %v544
    %822 = vmatpush1.msra.mxu0 %v545
    %823 = vmatprep.subr.mxu0 %v562
    %824 = vmatpush1.msra.mxu0 %v563
    %825 = vmatprep.subr.mxu0 %v580
    %826 = vmatpush1.msra.mxu0 %v581
    %827 = vmatprep.subr.mxu0 %v598
    %828 = vmatpush1.msra.mxu0 %v599
    %829 = vmatprep.subr.mxu0 %v530
    %830 = vmatpush1.msra.mxu0 %v529
    %831 = vmatprep.subr.mxu0 %v621
    %832 = vmatpush1.msra.mxu0 %v616
    %833 = vmatprep.subr.mxu0 %v639
    %834 = vmatpush1.msra.mxu0 %v634
    %835 = vmatprep.subr.mxu0 %v657
    %836 = vmatpush1.msra.mxu0 %v652
    %837 = vmatprep.subr.mxu0 %v675
    %838 = vmatpush1.msra.mxu0 %v670
    %839 = vmatprep.subr.mxu0 0.0
    %840 = vmatpush1.msra.mxu0 0.0
    %841 = vmatprep.subr.mxu0 0.0
    %842 = vmatpush1.msra.mxu0 0.0
    %843 = vmatprep.subr.mxu0 0.0
    %844 = vmatpush1.msra.mxu0 0.0
    %845 = vmatprep.subr.mxu0 0.0
    %846 = vmatpush1.msra.mxu0 0.0
    %847 = vmatprep.subr.mxu0 0.0
    %848 = vmatpush1.msra.mxu0 0.0
    %849 = vmatprep.subr.mxu0 0.0
    %850 = vmatpush1.msra.mxu0 0.0
    %851 = vmatprep.subr.mxu0 0.0
    %852 = vmatpush1.msra.mxu0 0.0
    %853 = vmatprep.subr.mxu0 0.0
    %854 = vmatpush1.msra.mxu0 0.0
    %855 = vmatprep.subr.mxu0 0.0
    %856 = vmatpush1.msra.mxu0 0.0
    %857 = vmatprep.subr.mxu0 0.0
    %858 = vmatpush1.msra.mxu0 0.0
    %859 = vmatprep.subr.mxu0 0.0
    %860 = vmatpush1.msra.mxu0 0.0
    %861 = vmatprep.subr.mxu0 0.0
    %862 = vmatpush1.msra.mxu0 0.0
    %863 = vmatprep.subr.mxu0 0.0
    %864 = vmatpush1.msra.mxu0 0.0
    %865 = vmatprep.subr.mxu0 0.0
    %866 = vmatpush1.msra.mxu0 0.0
    %867 = vmatprep.subr.mxu0 0.0
    %868 = vmatpush1.msra.mxu0 0.0
    %869 = vmatprep.subr.mxu0 0.0
    %870 = vmatpush1.msra.mxu0 0.0
    %871 = vmatprep.subr.mxu0 0.0
    %872 = vmatpush1.msra.mxu0 0.0
    %873 = vmatprep.subr.mxu0 0.0
    %874 = vmatpush1.msra.mxu0 0.0
    %875 = vmatprep.subr.mxu0 0.0
    %876 = vmatpush1.msra.mxu0 0.0
    %877 = vmatprep.subr.mxu0 0.0
    %878 = vmatpush1.msra.mxu0 0.0
    %879 = vmatprep.subr.mxu0 0.0
    %880 = vmatpush1.msra.mxu0 0.0
    %881 = vmatprep.subr.mxu0 0.0
    %882 = vmatpush1.msra.mxu0 0.0
    %883 = vmatprep.subr.mxu0 0.0
    %884 = vmatpush1.msra.mxu0 0.0
    %885 = vmatprep.mubr.f32.mxu0 0.0
    %886 = vmatmul.mubr.f32.gmra.mrb[0].mxu0 %v677
    %v887 = vpop.f32.mrb[0].mxu0
    %v888 = vadd.f32 0.0, %v887
    %v889 = vpop.f32.mrb[0].mxu0
    %v890 = vadd.f32 0.0, %v889
    %891 = vdwg.mxu0
    %v892 = vld [vmem:[%s6] sm:$0xff]
    %v893 = vld [vmem:[%s7] sm:$0xff]
    %v894 = vmul.f32 %v746, %v427
    %v895 = vmul.f32 %v748, %v431
    %v896 = vmul.f32 %v817, %v435
    %v897 = vmul.f32 %v819, %v439
    %v898 = vmul.f32 %v888, %v443
    %v899 = vmul.f32 %v890, %v447
    %v900 = vadd.f32 %v894, %v895
    %v901 = vadd.f32 %v900, %v896
    %v902 = vadd.f32 %v901, %v897
    %v903 = vadd.f32 %v902, %v898
    %v904 = vadd.f32 %v903, %v899
    %905 = vadd.xlane.f32.xlu0 %v904
    %v906 = vpop.xlane.xlu0 %905
    %v907 = vmul.f32 %v906, 0.001953125
    %v908 = vsub.f32 %v746, %v907
    %v909 = vsub.f32 %v748, %v907
    %v910 = vsub.f32 %v817, %v907
    %v911 = vsub.f32 %v819, %v907
    %v912 = vsub.f32 %v888, %v907
    %v913 = vsub.f32 %v890, %v907
    %v914 = vmul.f32 %v908, %v427
    %v915 = vmul.f32 %v909, %v431
    %v916 = vmul.f32 %v910, %v435
    %v917 = vmul.f32 %v911, %v439
    %v918 = vmul.f32 %v912, %v443
    %v919 = vmul.f32 %v913, %v447
    %v920 = vmul.f32 %v914, %v914
    %v921 = vmul.f32 %v915, %v915
    %v922 = vmul.f32 %v916, %v916
    %v923 = vmul.f32 %v917, %v917
    %v924 = vmul.f32 %v918, %v918
    %v925 = vmul.f32 %v919, %v919
    %v926 = vadd.f32 %v920, %v921
    %v927 = vadd.f32 %v926, %v922
    %v928 = vadd.f32 %v927, %v923
    %v929 = vadd.f32 %v928, %v924
    %v930 = vadd.f32 %v929, %v925
    %931 = vadd.xlane.f32.xlu0 %v930
    %v932 = vpop.xlane.xlu0 %931
    %v933 = vmul.f32 %v932, 0.001953125
    %v934 = vadd.f32 %v933, 1e-05
    %v935 = vrsqrt.pop %v934
    %v936 = vmul.f32 %v892, %v935
    %938 = vset.pattern.permute.xlu0 0
    %939 = vperm.xlu0 %938, %v936
    %v940 = vpop.permute.xlu0 %939
    %v942 = vmul.f32 %v914, %v940
    %v943 = vmul.f32 %v915, %v940
    %v944 = vmul.f32 %v916, %v940
    %v945 = vmul.f32 %v917, %v940
    %v946 = vmul.f32 %v918, %v940
    %v947 = vmul.f32 %v919, %v940
    %949 = vset.pattern.permute.xlu0 0
    %950 = vperm.xlu0 %949, %v893
    %v951 = vpop.permute.xlu0 %950
    %v953 = vadd.f32 %v942, %v951
    %v954 = vadd.f32 %v943, %v951
    %v955 = vadd.f32 %v944, %v951
    %v956 = vadd.f32 %v945, %v951
    %v957 = vadd.f32 %v946, %v951
    %v958 = vadd.f32 %v947, %v951
    %v959 = vadd.f32 %v953, %v42
    %v960 = vadd.f32 %v954, %v43
    %v961 = vadd.f32 %v955, %v44
    %v962 = vadd.f32 %v956, %v45
    %v963 = vadd.f32 %v957, %v46
    %v964 = vadd.f32 %v958, %v47
    %v965 = vmax.f32 %v959, 0.0
    %v966 = vmax.f32 %v960, 0.0
    %v967 = vmax.f32 %v961, 0.0
    %v968 = vmax.f32 %v962, 0.0
    %v969 = vmax.f32 %v963, 0.0
    %v970 = vmax.f32 %v964, 0.0
    %v971 = vmul.f32 %v965, %v427
    %v972 = vmul.f32 %v966, %v431
    %v973 = vmul.f32 %v967, %v435
    %v974 = vmul.f32 %v968, %v439
    %v975 = vmul.f32 %v969, %v443
    %v976 = vmul.f32 %v970, %v447
    %977 = vst [vmem:[#allocation5] sm:$0xff] %v971
    %978 = vst [vmem:[#allocation5 + $0x8] sm:$0xff] %v972
    %979 = vst [vmem:[#allocation5 + $0x10] sm:$0xff] %v973
    %980 = vst [vmem:[#allocation5 + $0x18] sm:$0xff] %v974
    %981 = vst [vmem:[#allocation5 + $0x20] sm:$0xff] %v975
    %982 = vst [vmem:[#allocation5 + $0x28] sm:$0xff] %v976
    // Predicated region
    $region38: #{tpu_custom_call.1} parent=1 // pred_check
      _
    $region39: #{tpu_custom_call.1} parent=1 // pred_check_branch
      %984 = sbr.rel (0) target = $region41
    $region40: #{tpu_custom_call.1} parent=1 // pred_region
      %s986 = ssub.s32 768, 768
      %987 = vsyncadd [#allocation4], %s986
      %s989 = sshll.u32 [#allocation5], 4
      %s990 = int_to_ptr.vmem [resolvable:$true] %s989
      %992 = dma.vmem_to_hbm [thread:$0]  %s990, 768, %s8, [#allocation4]
    $region41: #{tpu_custom_call.1} parent=1 // pred_fallthru
      _
    // Predicated region
    $region42: #{tpu_custom_call.1} parent=1 // pred_check
      _
    $region43: #{tpu_custom_call.1} parent=1 // pred_check_branch
      %994 = sbr.rel (0) target = $region45
    $region44: #{tpu_custom_call.1} parent=1 // pred_region
      %995 = dma.done [#allocation4], 768
    $region45: #{tpu_custom_call.1} parent=1 // pred_fallthru
      _
    %996 = vsyncpa [#allocation3], 1
    %997 = vsyncpa [#allocation4], 1

</llo_original>
